<compile_context>
chip_gen: v5e
topology: v5e:2x2
jax: 0.10.0
libtpu: 0.0.40
codegen_flags: <defaults>
</compile_context>

<pallas_src>
import math
from functools import partial

import jax
import jax.numpy as jnp
from jax.experimental import pallas as pl
from jax.experimental.pallas import tpu as pltpu


def rnn_kernel(x_ref, wx_ref, wh_ref, h_ref, *, T):
    """Forward: hoisted input projection, unrolled recurrence, emits final h.

    x_ref  : [T*Bp, F+1]  time-major rows (row = t*Bp + b), last column = 1.0
                          for real rows / 0.0 for pad rows (bias folded in Wx).
    wx_ref : [F+1, 4H]    stacked gate input weights (f | u | o | cand) with
                          the gate bias appended as the last row.
    wh_ref : [H, 4H]      stacked gate hidden weights (f | u | o | cand).
    h_ref  : [Bp, H]      final hidden state (pad rows remain zero).
    """
    TB = x_ref.shape[0]
    Bp = TB // T                      # padded batch = 8 (one sublane tile)
    H = wh_ref.shape[0]

    # Hoisted input projection + bias (ones-column trick): one MXU call covers
    # all T steps; nothing but h @ Wh remains on the serial recurrence path.
    gates_x = jnp.dot(x_ref[...], wx_ref[...],
                      preferred_element_type=jnp.float32)          # [T*Bp, 4H]

    wh = wh_ref[...]                                                # [H, 4H]
    h = jnp.zeros((Bp, H), jnp.float32)
    c = jnp.zeros((Bp, H), jnp.float32)

    # Fully-unrolled recurrence (T small, static): cross-step visibility lets
    # the scheduler interleave MXU / EUP / VPU work from adjacent steps.
    for t in range(T):
        # Aligned [8, 128] sublane block (Bp == 8, 4H == 128 == one vreg row).
        gates = (gates_x[t * Bp:(t + 1) * Bp, :]
                 + jnp.dot(h, wh, preferred_element_type=jnp.float32))  # [Bp,4H]

        # Full-vreg transcendentals, gate columns extracted afterwards:
        #   sigmoid(x) = 0.5*tanh(0.5*x) + 0.5  (1 EUP push + 2 VPU ops)
        #   tanh(x)                              (1 EUP push)
        sig = 0.5 * jnp.tanh(0.5 * gates) + 0.5                     # [Bp, 4H]
        tnh = jnp.tanh(gates)                                       # [Bp, 4H]

        f = sig[:, 0 * H:1 * H]        # forget gate
        u = sig[:, 1 * H:2 * H]        # update gate
        o = sig[:, 2 * H:3 * H]        # output gate
        g = tnh[:, 3 * H:4 * H]        # update candidates

        c = f * c + u * g
        h = o * jnp.tanh(c)
        # TODO(synk): rnn_dropout on h in train mode omitted (eval semantics).

    h_ref[...] = h.astype(h_ref.dtype)


def rnn_forward(x_btf, pred_month, latlons, params):
    """x_btf: [B, T, F] (batch_first, matches PyTorch)."""
    B, T, F = x_btf.shape
    H = params["wh"].shape[0]
    B_pad = 8                                  # one sublane tile

    # Time-major 2-D slab, batch padded to 8 with zero rows, ones column
    # appended so the gate bias folds into Wx (one fewer tiny operand and the
    # bias add rides the already-hoisted MXU call).
    x_tm = jnp.swapaxes(x_btf, 0, 1)                               # [T, B, F]
    x_aug = jnp.concatenate(
        [x_tm, jnp.ones((T, B, 1), jnp.float32)], axis=-1)         # [T, B, F+1]
    x_aug = jnp.pad(x_aug, ((0, 0), (0, B_pad - B), (0, 0)))       # zero pad rows
    x_slab = x_aug.reshape(T * B_pad, F + 1)                       # [T*Bp, F+1]

    wx_aug = jnp.concatenate([params["wx"], params["bg"]], axis=0)  # [F+1, 4H]

    vmem = pl.BlockSpec(memory_space=pltpu.MemorySpace.VMEM)
    h_final = pl.pallas_call(
        partial(rnn_kernel, T=T),
        out_shape=jax.ShapeDtypeStruct((B_pad, H), jnp.float32),
        in_specs=[vmem, vmem, vmem],
        out_specs=vmem,
    )(x_slab, wx_aug, params["wh"])

    h = h_final[:B]                                                 # [B, H]

    # Dense head (Linear -> Linear, no nonlinearity in the original module),
    # precomposed and applied in cheap XLA on the tiny [:B] hidden state:
    #   out = h @ (W1_h @ W2) + (pm @ W1_pm + ll @ W1_ll + b1) @ W2 + b2
    w_head = params["w1h"] @ params["w2"]                           # [H, 1]
    head_bias = ((pred_month @ params["w1pm"]
                  + latlons @ params["w1ll"]
                  + params["b1"]) @ params["w2"]
                 + params["b2"])                                    # [B, 1]
    return h @ w_head + head_bias


def init_params(key, F, H, D1):
    """Deterministic init mirroring RNN.initialize_weights()."""
    ks = jax.random.split(key, 10)
    sqrt_k = math.sqrt(1.0 / H)

    # Four gates, each Linear(in=F+H, out=H): weight [H, F+H], bias [H],
    # uniform(-sqrt_k, sqrt_k).
    # Stacking order: forget, update, output, candidate (sigmoid gates first).
    gate_ws, gate_bs = [], []
    for i in range(4):
        w = jax.random.uniform(ks[i], (H, F + H), jnp.float32, -sqrt_k, sqrt_k)
        b = jax.random.uniform(ks[4 + i], (H,), jnp.float32, -sqrt_k, sqrt_k)
        gate_ws.append(w)
        gate_bs.append(b)
    # y = x @ Wx + h @ Wh + b form.
    wx = jnp.concatenate([w[:, :F].T for w in gate_ws], axis=1)      # [F, 4H]
    wh = jnp.concatenate([w[:, F:].T for w in gate_ws], axis=1)      # [H, 4H]
    bg = jnp.concatenate(gate_bs, axis=0)[None, :]                   # [1, 4H]

    D_in = H + 12 + 2  # hidden + pred_month one-hot + latlons

    def kaiming_uniform(k, out_f, in_f):
        bound = math.sqrt(6.0 / in_f)  # torch kaiming_uniform_ default gain sqrt(2)
        return jax.random.uniform(k, (out_f, in_f), jnp.float32, -bound, bound)

    w1 = kaiming_uniform(ks[8], D1, D_in)     # [D1, D_in], bias = 0
    w2 = kaiming_uniform(ks[9], 1, D1)        # [1, D1],    bias = 0

    w1_t = w1.T                                # [D_in, D1]
    return dict(
        wx=wx, wh=wh, bg=bg,
        w1h=w1_t[:H, :], w1pm=w1_t[H:H + 12, :], w1ll=w1_t[H + 12:, :],
        b1=jnp.zeros((1, D1), jnp.float32),
        w2=w2.T, b2=jnp.zeros((1, 1), jnp.float32),
    )


def reference_forward(x_btf, pred_month, latlons, params):
    """Pure-JAX reference of the original (unfused) module math."""
    B, T, F = x_btf.shape
    H = params["wh"].shape[0]
    h = jnp.zeros((B, H), jnp.float32)
    c = jnp.zeros((B, H), jnp.float32)
    for t in range(T):
        gates = x_btf[:, t, :] @ params["wx"] + h @ params["wh"] + params["bg"]
        f = jax.nn.sigmoid(gates[:, 0:H])          # forget gate
        u = jax.nn.sigmoid(gates[:, H:2 * H])      # update gate
        o = jax.nn.sigmoid(gates[:, 2 * H:3 * H])  # output gate
        g = jnp.tanh(gates[:, 3 * H:4 * H])        # update candidates
        c = f * c + u * g
        h = o * jnp.tanh(c)
    h1 = (h @ params["w1h"] + pred_month @ params["w1pm"]
          + latlons @ params["w1ll"] + params["b1"])
    return h1 @ params["w2"] + params["b2"]


if __name__ == "__main__":
    B, T, F, H, D1 = 2, 8, 4, 32, 32

    key = jax.random.PRNGKey(0)
    k_x, k_pm, k_ll, k_p = jax.random.split(key, 4)

    x = jax.random.normal(k_x, (B, T, F), jnp.float32)
    # pred_month is a one-hot month indicator in the original model.
    months = jax.random.randint(k_pm, (B,), 0, 12)
    pred_month = jax.nn.one_hot(months, 12, dtype=jnp.float32)
    latlons = jax.random.normal(k_ll, (B, 2), jnp.float32)

    params = init_params(k_p, F, H, D1)

    out = rnn_forward(x, pred_month, latlons, params)
    out = jax.block_until_ready(out)

    ref = reference_forward(x, pred_month, latlons, params)
    assert out.shape == (B, 1)
    assert jnp.allclose(out, ref, atol=1e-4, rtol=1e-4), (out, ref)

    print("KERNEL_OK")
</pallas_src>

<mosaic_0001>
module attributes {stable_mosaic.version = 11 : i64} {
  func.func @rnn_kernel(%arg0: memref<64x5xf32, #tpu.memory_space<vmem>>, %arg1: memref<5x128xf32, #tpu.memory_space<vmem>>, %arg2: memref<32x128xf32, #tpu.memory_space<vmem>>, %arg3: memref<8x32xf32, #tpu.memory_space<vmem>>) attributes {dimension_semantics = [], scalar_prefetch = 0 : i64, scratch_operands = 0 : i64, tpu.core_type = #tpu.core_type<tc>} {
    %c0 = arith.constant 0 : index
    %c0_0 = arith.constant 0 : index
    %0 = vector.load %arg0[%c0, %c0_0] : memref<64x5xf32, #tpu.memory_space<vmem>>, vector<64x5xf32>
    %c0_1 = arith.constant 0 : index
    %c0_2 = arith.constant 0 : index
    %1 = vector.load %arg1[%c0_1, %c0_2] : memref<5x128xf32, #tpu.memory_space<vmem>>, vector<5x128xf32>
    %cst = arith.constant dense<0.000000e+00> : vector<64x128xf32>
    %2 = tpu.matmul %0, %1, %cst {dimension_numbers = #tpu.dot_dimension_numbers<[1], [0], [0], [1], [0, 0, 1, 1], [], []>} : vector<64x5xf32>, vector<5x128xf32>, vector<64x128xf32> -> vector<64x128xf32>
    %c0_3 = arith.constant 0 : index
    %c0_4 = arith.constant 0 : index
    %3 = vector.load %arg2[%c0_3, %c0_4] : memref<32x128xf32, #tpu.memory_space<vmem>>, vector<32x128xf32>
    %cst_5 = arith.constant 0.000000e+00 : f32
    %4 = vector.broadcast %cst_5 : f32 to vector<8x32xf32>
    %cst_6 = arith.constant 0.000000e+00 : f32
    %5 = vector.broadcast %cst_6 : f32 to vector<8x32xf32>
    %6 = vector.extract_strided_slice %2 {offsets = [0, 0], sizes = [8, 128], strides = [1, 1]} : vector<64x128xf32> to vector<8x128xf32>
    %cst_7 = arith.constant dense<0.000000e+00> : vector<8x128xf32>
    %7 = tpu.matmul %4, %3, %cst_7 {dimension_numbers = #tpu.dot_dimension_numbers<[1], [0], [0], [1], [0, 0, 1, 1], [], []>} : vector<8x32xf32>, vector<32x128xf32>, vector<8x128xf32> -> vector<8x128xf32>
    %8 = arith.addf %6, %7 : vector<8x128xf32>
    %cst_8 = arith.constant 5.000000e-01 : f32
    %9 = vector.broadcast %cst_8 : f32 to vector<8x128xf32>
    %10 = arith.mulf %9, %8 : vector<8x128xf32>
    %11 = math.tanh %10 : vector<8x128xf32>
    %cst_9 = arith.constant 5.000000e-01 : f32
    %12 = vector.broadcast %cst_9 : f32 to vector<8x128xf32>
    %13 = arith.mulf %12, %11 : vector<8x128xf32>
    %cst_10 = arith.constant 5.000000e-01 : f32
    %14 = vector.broadcast %cst_10 : f32 to vector<8x128xf32>
    %15 = arith.addf %13, %14 : vector<8x128xf32>
    %16 = math.tanh %8 : vector<8x128xf32>
    %17 = vector.extract_strided_slice %15 {offsets = [0, 0], sizes = [8, 32], strides = [1, 1]} : vector<8x128xf32> to vector<8x32xf32>
    %18 = vector.extract_strided_slice %15 {offsets = [0, 32], sizes = [8, 32], strides = [1, 1]} : vector<8x128xf32> to vector<8x32xf32>
    %19 = vector.extract_strided_slice %15 {offsets = [0, 64], sizes = [8, 32], strides = [1, 1]} : vector<8x128xf32> to vector<8x32xf32>
    %20 = vector.extract_strided_slice %16 {offsets = [0, 96], sizes = [8, 32], strides = [1, 1]} : vector<8x128xf32> to vector<8x32xf32>
    %21 = arith.mulf %17, %5 : vector<8x32xf32>
    %22 = arith.mulf %18, %20 : vector<8x32xf32>
    %23 = arith.addf %21, %22 : vector<8x32xf32>
    %24 = math.tanh %23 : vector<8x32xf32>
    %25 = arith.mulf %19, %24 : vector<8x32xf32>
    %26 = vector.extract_strided_slice %2 {offsets = [8, 0], sizes = [8, 128], strides = [1, 1]} : vector<64x128xf32> to vector<8x128xf32>
    %cst_11 = arith.constant dense<0.000000e+00> : vector<8x128xf32>
    %27 = tpu.matmul %25, %3, %cst_11 {dimension_numbers = #tpu.dot_dimension_numbers<[1], [0], [0], [1], [0, 0, 1, 1], [], []>} : vector<8x32xf32>, vector<32x128xf32>, vector<8x128xf32> -> vector<8x128xf32>
    %28 = arith.addf %26, %27 : vector<8x128xf32>
    %cst_12 = arith.constant 5.000000e-01 : f32
    %29 = vector.broadcast %cst_12 : f32 to vector<8x128xf32>
    %30 = arith.mulf %29, %28 : vector<8x128xf32>
    %31 = math.tanh %30 : vector<8x128xf32>
    %cst_13 = arith.constant 5.000000e-01 : f32
    %32 = vector.broadcast %cst_13 : f32 to vector<8x128xf32>
    %33 = arith.mulf %32, %31 : vector<8x128xf32>
    %cst_14 = arith.constant 5.000000e-01 : f32
    %34 = vector.broadcast %cst_14 : f32 to vector<8x128xf32>
    %35 = arith.addf %33, %34 : vector<8x128xf32>
    %36 = math.tanh %28 : vector<8x128xf32>
    %37 = vector.extract_strided_slice %35 {offsets = [0, 0], sizes = [8, 32], strides = [1, 1]} : vector<8x128xf32> to vector<8x32xf32>
    %38 = vector.extract_strided_slice %35 {offsets = [0, 32], sizes = [8, 32], strides = [1, 1]} : vector<8x128xf32> to vector<8x32xf32>
    %39 = vector.extract_strided_slice %35 {offsets = [0, 64], sizes = [8, 32], strides = [1, 1]} : vector<8x128xf32> to vector<8x32xf32>
    %40 = vector.extract_strided_slice %36 {offsets = [0, 96], sizes = [8, 32], strides = [1, 1]} : vector<8x128xf32> to vector<8x32xf32>
    %41 = arith.mulf %37, %23 : vector<8x32xf32>
    %42 = arith.mulf %38, %40 : vector<8x32xf32>
    %43 = arith.addf %41, %42 : vector<8x32xf32>
    %44 = math.tanh %43 : vector<8x32xf32>
    %45 = arith.mulf %39, %44 : vector<8x32xf32>
    %46 = vector.extract_strided_slice %2 {offsets = [16, 0], sizes = [8, 128], strides = [1, 1]} : vector<64x128xf32> to vector<8x128xf32>
    %cst_15 = arith.constant dense<0.000000e+00> : vector<8x128xf32>
    %47 = tpu.matmul %45, %3, %cst_15 {dimension_numbers = #tpu.dot_dimension_numbers<[1], [0], [0], [1], [0, 0, 1, 1], [], []>} : vector<8x32xf32>, vector<32x128xf32>, vector<8x128xf32> -> vector<8x128xf32>
    %48 = arith.addf %46, %47 : vector<8x128xf32>
    %cst_16 = arith.constant 5.000000e-01 : f32
    %49 = vector.broadcast %cst_16 : f32 to vector<8x128xf32>
    %50 = arith.mulf %49, %48 : vector<8x128xf32>
    %51 = math.tanh %50 : vector<8x128xf32>
    %cst_17 = arith.constant 5.000000e-01 : f32
    %52 = vector.broadcast %cst_17 : f32 to vector<8x128xf32>
    %53 = arith.mulf %52, %51 : vector<8x128xf32>
    %cst_18 = arith.constant 5.000000e-01 : f32
    %54 = vector.broadcast %cst_18 : f32 to vector<8x128xf32>
    %55 = arith.addf %53, %54 : vector<8x128xf32>
    %56 = math.tanh %48 : vector<8x128xf32>
    %57 = vector.extract_strided_slice %55 {offsets = [0, 0], sizes = [8, 32], strides = [1, 1]} : vector<8x128xf32> to vector<8x32xf32>
    %58 = vector.extract_strided_slice %55 {offsets = [0, 32], sizes = [8, 32], strides = [1, 1]} : vector<8x128xf32> to vector<8x32xf32>
    %59 = vector.extract_strided_slice %55 {offsets = [0, 64], sizes = [8, 32], strides = [1, 1]} : vector<8x128xf32> to vector<8x32xf32>
    %60 = vector.extract_strided_slice %56 {offsets = [0, 96], sizes = [8, 32], strides = [1, 1]} : vector<8x128xf32> to vector<8x32xf32>
    %61 = arith.mulf %57, %43 : vector<8x32xf32>
    %62 = arith.mulf %58, %60 : vector<8x32xf32>
    %63 = arith.addf %61, %62 : vector<8x32xf32>
    %64 = math.tanh %63 : vector<8x32xf32>
    %65 = arith.mulf %59, %64 : vector<8x32xf32>
    %66 = vector.extract_strided_slice %2 {offsets = [24, 0], sizes = [8, 128], strides = [1, 1]} : vector<64x128xf32> to vector<8x128xf32>
    %cst_19 = arith.constant dense<0.000000e+00> : vector<8x128xf32>
    %67 = tpu.matmul %65, %3, %cst_19 {dimension_numbers = #tpu.dot_dimension_numbers<[1], [0], [0], [1], [0, 0, 1, 1], [], []>} : vector<8x32xf32>, vector<32x128xf32>, vector<8x128xf32> -> vector<8x128xf32>
    %68 = arith.addf %66, %67 : vector<8x128xf32>
    %cst_20 = arith.constant 5.000000e-01 : f32
    %69 = vector.broadcast %cst_20 : f32 to vector<8x128xf32>
    %70 = arith.mulf %69, %68 : vector<8x128xf32>
    %71 = math.tanh %70 : vector<8x128xf32>
    %cst_21 = arith.constant 5.000000e-01 : f32
    %72 = vector.broadcast %cst_21 : f32 to vector<8x128xf32>
    %73 = arith.mulf %72, %71 : vector<8x128xf32>
    %cst_22 = arith.constant 5.000000e-01 : f32
    %74 = vector.broadcast %cst_22 : f32 to vector<8x128xf32>
    %75 = arith.addf %73, %74 : vector<8x128xf32>
    %76 = math.tanh %68 : vector<8x128xf32>
    %77 = vector.extract_strided_slice %75 {offsets = [0, 0], sizes = [8, 32], strides = [1, 1]} : vector<8x128xf32> to vector<8x32xf32>
    %78 = vector.extract_strided_slice %75 {offsets = [0, 32], sizes = [8, 32], strides = [1, 1]} : vector<8x128xf32> to vector<8x32xf32>
    %79 = vector.extract_strided_slice %75 {offsets = [0, 64], sizes = [8, 32], strides = [1, 1]} : vector<8x128xf32> to vector<8x32xf32>
    %80 = vector.extract_strided_slice %76 {offsets = [0, 96], sizes = [8, 32], strides = [1, 1]} : vector<8x128xf32> to vector<8x32xf32>
    %81 = arith.mulf %77, %63 : vector<8x32xf32>
    %82 = arith.mulf %78, %80 : vector<8x32xf32>
    %83 = arith.addf %81, %82 : vector<8x32xf32>
    %84 = math.tanh %83 : vector<8x32xf32>
    %85 = arith.mulf %79, %84 : vector<8x32xf32>
    %86 = vector.extract_strided_slice %2 {offsets = [32, 0], sizes = [8, 128], strides = [1, 1]} : vector<64x128xf32> to vector<8x128xf32>
    %cst_23 = arith.constant dense<0.000000e+00> : vector<8x128xf32>
    %87 = tpu.matmul %85, %3, %cst_23 {dimension_numbers = #tpu.dot_dimension_numbers<[1], [0], [0], [1], [0, 0, 1, 1], [], []>} : vector<8x32xf32>, vector<32x128xf32>, vector<8x128xf32> -> vector<8x128xf32>
    %88 = arith.addf %86, %87 : vector<8x128xf32>
    %cst_24 = arith.constant 5.000000e-01 : f32
    %89 = vector.broadcast %cst_24 : f32 to vector<8x128xf32>
    %90 = arith.mulf %89, %88 : vector<8x128xf32>
    %91 = math.tanh %90 : vector<8x128xf32>
    %cst_25 = arith.constant 5.000000e-01 : f32
    %92 = vector.broadcast %cst_25 : f32 to vector<8x128xf32>
    %93 = arith.mulf %92, %91 : vector<8x128xf32>
    %cst_26 = arith.constant 5.000000e-01 : f32
    %94 = vector.broadcast %cst_26 : f32 to vector<8x128xf32>
    %95 = arith.addf %93, %94 : vector<8x128xf32>
    %96 = math.tanh %88 : vector<8x128xf32>
    %97 = vector.extract_strided_slice %95 {offsets = [0, 0], sizes = [8, 32], strides = [1, 1]} : vector<8x128xf32> to vector<8x32xf32>
    %98 = vector.extract_strided_slice %95 {offsets = [0, 32], sizes = [8, 32], strides = [1, 1]} : vector<8x128xf32> to vector<8x32xf32>
    %99 = vector.extract_strided_slice %95 {offsets = [0, 64], sizes = [8, 32], strides = [1, 1]} : vector<8x128xf32> to vector<8x32xf32>
    %100 = vector.extract_strided_slice %96 {offsets = [0, 96], sizes = [8, 32], strides = [1, 1]} : vector<8x128xf32> to vector<8x32xf32>
    %101 = arith.mulf %97, %83 : vector<8x32xf32>
    %102 = arith.mulf %98, %100 : vector<8x32xf32>
    %103 = arith.addf %101, %102 : vector<8x32xf32>
    %104 = math.tanh %103 : vector<8x32xf32>
    %105 = arith.mulf %99, %104 : vector<8x32xf32>
    %106 = vector.extract_strided_slice %2 {offsets = [40, 0], sizes = [8, 128], strides = [1, 1]} : vector<64x128xf32> to vector<8x128xf32>
    %cst_27 = arith.constant dense<0.000000e+00> : vector<8x128xf32>
    %107 = tpu.matmul %105, %3, %cst_27 {dimension_numbers = #tpu.dot_dimension_numbers<[1], [0], [0], [1], [0, 0, 1, 1], [], []>} : vector<8x32xf32>, vector<32x128xf32>, vector<8x128xf32> -> vector<8x128xf32>
    %108 = arith.addf %106, %107 : vector<8x128xf32>
    %cst_28 = arith.constant 5.000000e-01 : f32
    %109 = vector.broadcast %cst_28 : f32 to vector<8x128xf32>
    %110 = arith.mulf %109, %108 : vector<8x128xf32>
    %111 = math.tanh %110 : vector<8x128xf32>
    %cst_29 = arith.constant 5.000000e-01 : f32
    %112 = vector.broadcast %cst_29 : f32 to vector<8x128xf32>
    %113 = arith.mulf %112, %111 : vector<8x128xf32>
    %cst_30 = arith.constant 5.000000e-01 : f32
    %114 = vector.broadcast %cst_30 : f32 to vector<8x128xf32>
    %115 = arith.addf %113, %114 : vector<8x128xf32>
    %116 = math.tanh %108 : vector<8x128xf32>
    %117 = vector.extract_strided_slice %115 {offsets = [0, 0], sizes = [8, 32], strides = [1, 1]} : vector<8x128xf32> to vector<8x32xf32>
    %118 = vector.extract_strided_slice %115 {offsets = [0, 32], sizes = [8, 32], strides = [1, 1]} : vector<8x128xf32> to vector<8x32xf32>
    %119 = vector.extract_strided_slice %115 {offsets = [0, 64], sizes = [8, 32], strides = [1, 1]} : vector<8x128xf32> to vector<8x32xf32>
    %120 = vector.extract_strided_slice %116 {offsets = [0, 96], sizes = [8, 32], strides = [1, 1]} : vector<8x128xf32> to vector<8x32xf32>
    %121 = arith.mulf %117, %103 : vector<8x32xf32>
    %122 = arith.mulf %118, %120 : vector<8x32xf32>
    %123 = arith.addf %121, %122 : vector<8x32xf32>
    %124 = math.tanh %123 : vector<8x32xf32>
    %125 = arith.mulf %119, %124 : vector<8x32xf32>
    %126 = vector.extract_strided_slice %2 {offsets = [48, 0], sizes = [8, 128], strides = [1, 1]} : vector<64x128xf32> to vector<8x128xf32>
    %cst_31 = arith.constant dense<0.000000e+00> : vector<8x128xf32>
    %127 = tpu.matmul %125, %3, %cst_31 {dimension_numbers = #tpu.dot_dimension_numbers<[1], [0], [0], [1], [0, 0, 1, 1], [], []>} : vector<8x32xf32>, vector<32x128xf32>, vector<8x128xf32> -> vector<8x128xf32>
    %128 = arith.addf %126, %127 : vector<8x128xf32>
    %cst_32 = arith.constant 5.000000e-01 : f32
    %129 = vector.broadcast %cst_32 : f32 to vector<8x128xf32>
    %130 = arith.mulf %129, %128 : vector<8x128xf32>
    %131 = math.tanh %130 : vector<8x128xf32>
    %cst_33 = arith.constant 5.000000e-01 : f32
    %132 = vector.broadcast %cst_33 : f32 to vector<8x128xf32>
    %133 = arith.mulf %132, %131 : vector<8x128xf32>
    %cst_34 = arith.constant 5.000000e-01 : f32
    %134 = vector.broadcast %cst_34 : f32 to vector<8x128xf32>
    %135 = arith.addf %133, %134 : vector<8x128xf32>
    %136 = math.tanh %128 : vector<8x128xf32>
    %137 = vector.extract_strided_slice %135 {offsets = [0, 0], sizes = [8, 32], strides = [1, 1]} : vector<8x128xf32> to vector<8x32xf32>
    %138 = vector.extract_strided_slice %135 {offsets = [0, 32], sizes = [8, 32], strides = [1, 1]} : vector<8x128xf32> to vector<8x32xf32>
    %139 = vector.extract_strided_slice %135 {offsets = [0, 64], sizes = [8, 32], strides = [1, 1]} : vector<8x128xf32> to vector<8x32xf32>
    %140 = vector.extract_strided_slice %136 {offsets = [0, 96], sizes = [8, 32], strides = [1, 1]} : vector<8x128xf32> to vector<8x32xf32>
    %141 = arith.mulf %137, %123 : vector<8x32xf32>
    %142 = arith.mulf %138, %140 : vector<8x32xf32>
    %143 = arith.addf %141, %142 : vector<8x32xf32>
    %144 = math.tanh %143 : vector<8x32xf32>
    %145 = arith.mulf %139, %144 : vector<8x32xf32>
    %146 = vector.extract_strided_slice %2 {offsets = [56, 0], sizes = [8, 128], strides = [1, 1]} : vector<64x128xf32> to vector<8x128xf32>
    %cst_35 = arith.constant dense<0.000000e+00> : vector<8x128xf32>
    %147 = tpu.matmul %145, %3, %cst_35 {dimension_numbers = #tpu.dot_dimension_numbers<[1], [0], [0], [1], [0, 0, 1, 1], [], []>} : vector<8x32xf32>, vector<32x128xf32>, vector<8x128xf32> -> vector<8x128xf32>
    %148 = arith.addf %146, %147 : vector<8x128xf32>
    %cst_36 = arith.constant 5.000000e-01 : f32
    %149 = vector.broadcast %cst_36 : f32 to vector<8x128xf32>
    %150 = arith.mulf %149, %148 : vector<8x128xf32>
    %151 = math.tanh %150 : vector<8x128xf32>
    %cst_37 = arith.constant 5.000000e-01 : f32
    %152 = vector.broadcast %cst_37 : f32 to vector<8x128xf32>
    %153 = arith.mulf %152, %151 : vector<8x128xf32>
    %cst_38 = arith.constant 5.000000e-01 : f32
    %154 = vector.broadcast %cst_38 : f32 to vector<8x128xf32>
    %155 = arith.addf %153, %154 : vector<8x128xf32>
    %156 = math.tanh %148 : vector<8x128xf32>
    %157 = vector.extract_strided_slice %155 {offsets = [0, 0], sizes = [8, 32], strides = [1, 1]} : vector<8x128xf32> to vector<8x32xf32>
    %158 = vector.extract_strided_slice %155 {offsets = [0, 32], sizes = [8, 32], strides = [1, 1]} : vector<8x128xf32> to vector<8x32xf32>
    %159 = vector.extract_strided_slice %155 {offsets = [0, 64], sizes = [8, 32], strides = [1, 1]} : vector<8x128xf32> to vector<8x32xf32>
    %160 = vector.extract_strided_slice %156 {offsets = [0, 96], sizes = [8, 32], strides = [1, 1]} : vector<8x128xf32> to vector<8x32xf32>
    %161 = arith.mulf %157, %143 : vector<8x32xf32>
    %162 = arith.mulf %158, %160 : vector<8x32xf32>
    %163 = arith.addf %161, %162 : vector<8x32xf32>
    %164 = math.tanh %163 : vector<8x32xf32>
    %165 = arith.mulf %159, %164 : vector<8x32xf32>
    %c0_39 = arith.constant 0 : index
    %c0_40 = arith.constant 0 : index
    %166 = vector.load %arg3[%c0_39, %c0_40] : memref<8x32xf32, #tpu.memory_space<vmem>>, vector<8x32xf32>
    tpu.vector_store %arg3[%c0_39, %c0_40], %165 {strides = array<i32>} : memref<8x32xf32, #tpu.memory_space<vmem>>, vector<8x32xf32>,
    return
  }
}

</mosaic_0001>

<llo_original>
// kernel: tpu_custom_call.1
$region0: #{tpu_custom_call.1}
  #allocation0 [shape = 'u32[]', space=smem, size = 0x4, offset = 0x4, fixed_abs, tag = 'smem constant byte address 0x4 - core index']
  #allocation1 [shape = 'u32[72,128]{1,0:T(1,128)}', space=vmem, size = 0x9000, scoped, tag = 'internal scratch']
  %s0 = inlined_call_operand.vmem [shape: f32[64,5], index: 0, kind: input, shape index: {}]
  %s1 = inlined_call_operand.vmem [shape: f32[5,128], index: 1, kind: input, shape index: {}]
  %s2 = inlined_call_operand.vmem [shape: f32[32,128], index: 2, kind: input, shape index: {}]
  %s3 = inlined_call_operand.hbm [shape: f32[8,32], index: 3, kind: output, shape index: {}]
  %s4 = sld [smem:[#allocation0]]
  $region22: #{tpu_custom_call.1} parent=0
    _
  %s6 = ssub.s32 1, %s4
  %s7 = scalar_select 0, %s6, %s4
  $region1: #{tpu_custom_call.1} parent=0
    #allocation2 [shape = 'u8[4096]{0}', space=vmem, size = 0x1000, scoped, tag = 'output window, operand 0, single buffered']
    #allocation3 [shape = 's32[1]{0}', space=sflag, size = 0x4, scoped, tag = 'scoped memory for tpu_custom_call.1']
    %8 = vsyncpa [#allocation3], 0
    // Predicated region
    $region2: #{tpu_custom_call.1} parent=1 // pred_check
      _
    $region3: #{tpu_custom_call.1} parent=1 // pred_check_branch
      %10 = sbr.rel (0) target = $region5
    $region4: #{tpu_custom_call.1} parent=1 // pred_region
      _
    $region5: #{tpu_custom_call.1} parent=1 // pred_fallthru
      _
    // Predicated region
    $region6: #{tpu_custom_call.1} parent=1 // pred_check
      _
    $region7: #{tpu_custom_call.1} parent=1 // pred_check_branch
      %12 = sbr.rel (0) target = $region9
    $region8: #{tpu_custom_call.1} parent=1 // pred_region
      _
    $region9: #{tpu_custom_call.1} parent=1 // pred_fallthru
      _
    // Predicated region
    $region10: #{tpu_custom_call.1} parent=1 // pred_check
      _
    $region11: #{tpu_custom_call.1} parent=1 // pred_check_branch
      %14 = sbr.rel (0) target = $region13
    $region12: #{tpu_custom_call.1} parent=1 // pred_region
      _
    $region13: #{tpu_custom_call.1} parent=1 // pred_fallthru
      _
    %v15 = vld [vmem:[%s0] sm:$0xff]
    %v16 = vld [vmem:[%s0 + $0x8] sm:$0xff]
    %v17 = vld [vmem:[%s0 + $0x10] sm:$0xff]
    %v18 = vld [vmem:[%s0 + $0x18] sm:$0xff]
    %v19 = vld [vmem:[%s0 + $0x20] sm:$0xff]
    %v20 = vld [vmem:[%s0 + $0x28] sm:$0xff]
    %v21 = vld [vmem:[%s0 + $0x30] sm:$0xff]
    %v22 = vld [vmem:[%s0 + $0x38] sm:$0xff]
    %v23 = vld [vmem:[%s1] sm:$0x1f]
    %vm24 = vcmask 39936
    %v26 = vsel %vm24, %v15, 0
    %v29 = vsel %vm24, %v16, 0
    %v32 = vsel %vm24, %v17, 0
    %v35 = vsel %vm24, %v18, 0
    %v38 = vsel %vm24, %v19, 0
    %v41 = vsel %vm24, %v20, 0
    %v44 = vsel %vm24, %v21, 0
    %v47 = vsel %vm24, %v22, 0
    %vm49 = vcmask 1044480
    %v51 = vsel %vm49, %v23, 0
    %53 = vmatpush.msra.mxu0 0.0
    %54 = vmatpush.msra.mxu0 0.0
    %55 = vmatpush.msra.mxu0 0.0
    %56 = vmatpush.msra.mxu0 0.0
    %57 = vmatpush.msra.mxu0 0.0
    %58 = vmatpush.msra.mxu0 0.0
    %59 = vmatpush.msra.mxu0 0.0
    %60 = vmatpush.msra.mxu0 0.0
    %61 = vmatpush.msra.mxu0 0.0
    %62 = vmatpush.msra.mxu0 0.0
    %63 = vmatpush.msra.mxu0 0.0
    %64 = vmatpush.msra.mxu0 0.0
    %65 = vmatpush.msra.mxu0 0.0
    %66 = vmatpush.msra.mxu0 0.0
    %67 = vmatpush.msra.mxu0 0.0
    %68 = vmatpush.msra.mxu0 %v51
    %69 = vmatmul.f32.gmra.mxu0 %v26
    %v70 = vpop.f32.mrf.mxu0
    %v71 = vadd.f32 0.0, %v70
    %72 = vmatmul.f32.gmra.mxu0 %v29
    %v73 = vpop.f32.mrf.mxu0
    %v74 = vadd.f32 0.0, %v73
    %75 = vmatmul.f32.gmra.mxu0 %v32
    %v76 = vpop.f32.mrf.mxu0
    %v77 = vadd.f32 0.0, %v76
    %78 = vmatmul.f32.gmra.mxu0 %v35
    %v79 = vpop.f32.mrf.mxu0
    %v80 = vadd.f32 0.0, %v79
    %81 = vmatmul.f32.gmra.mxu0 %v38
    %v82 = vpop.f32.mrf.mxu0
    %v83 = vadd.f32 0.0, %v82
    %84 = vmatmul.f32.gmra.mxu0 %v41
    %v85 = vpop.f32.mrf.mxu0
    %v86 = vadd.f32 0.0, %v85
    %87 = vmatmul.f32.gmra.mxu0 %v44
    %v88 = vpop.f32.mrf.mxu0
    %v89 = vadd.f32 0.0, %v88
    %90 = vmatmul.f32.gmra.mxu0 %v47
    %v91 = vpop.f32.mrf.mxu0
    %v92 = vadd.f32 0.0, %v91
    %93 = vdwg.mxu0
    %v94 = vld [vmem:[%s2] sm:$0xff]
    %v95 = vld [vmem:[%s2 + $0x8] sm:$0xff]
    %v96 = vld [vmem:[%s2 + $0x10] sm:$0xff]
    %v97 = vld [vmem:[%s2 + $0x18] sm:$0xff]
    %vm98 = vcmask 261120
    %v100 = vsel %vm98, 0.0, 0
    %102 = vmatpush.msra.mxu0 0.0
    %103 = vmatpush.msra.mxu0 0.0
    %104 = vmatpush.msra.mxu0 0.0
    %105 = vmatpush.msra.mxu0 0.0
    %106 = vmatpush.msra.mxu0 0.0
    %107 = vmatpush.msra.mxu0 0.0
    %108 = vmatpush.msra.mxu0 0.0
    %109 = vmatpush.msra.mxu0 0.0
    %110 = vmatpush.msra.mxu0 0.0
    %111 = vmatpush.msra.mxu0 0.0
    %112 = vmatpush.msra.mxu0 0.0
    %113 = vmatpush.msra.mxu0 0.0
    %114 = vmatpush.msra.mxu0 %v97
    %115 = vmatpush.msra.mxu0 %v96
    %116 = vmatpush.msra.mxu0 %v95
    %117 = vmatpush.msra.mxu0 %v94
    %118 = vmatmul.f32.gmra.mxu0 %v100
    %v119 = vpop.f32.mrf.mxu0
    %v120 = vadd.f32 0.0, %v119
    %121 = vdwg.mxu0
    %v122 = vadd.f32 %v71, %v120
    %v123 = vmul.f32 %v122, 0.5
    %v124 = vtanh.pop %v123
    %v125 = vmul.f32 %v124, 0.5
    %v126 = vadd.f32 %v125, 0.5
    %v127 = vtanh.pop %v122
    %v128 = vmul.f32 %v126, 0.0
    %130 = vrot.lane.b32.xlu0 %v127, 64
    %v131 = vpop.permute.xlu0 %130
    %v133 = vmul.f32 %v126, %v131
    %135 = vrot.lane.b32.xlu0 %v133, 96
    %v136 = vpop.permute.xlu0 %135
    %v138 = vadd.f32 %v128, %v136
    %v139 = vtanh.pop %v138
    %141 = vrot.lane.b32.xlu0 %v139, 64
    %v142 = vpop.permute.xlu0 %141
    %v144 = vmul.f32 %v126, %v142
    %146 = vrot.lane.b32.xlu0 %v144, 64
    %v147 = vpop.permute.xlu0 %146
    %v148 = vsel %vm98, %v147, 0
    %150 = vmatpush.msra.mxu0 0.0
    %151 = vmatpush.msra.mxu0 0.0
    %152 = vmatpush.msra.mxu0 0.0
    %153 = vmatpush.msra.mxu0 0.0
    %154 = vmatpush.msra.mxu0 0.0
    %155 = vmatpush.msra.mxu0 0.0
    %156 = vmatpush.msra.mxu0 0.0
    %157 = vmatpush.msra.mxu0 0.0
    %158 = vmatpush.msra.mxu0 0.0
    %159 = vmatpush.msra.mxu0 0.0
    %160 = vmatpush.msra.mxu0 0.0
    %161 = vmatpush.msra.mxu0 0.0
    %162 = vmatpush.msra.mxu0 %v97
    %163 = vmatpush.msra.mxu0 %v96
    %164 = vmatpush.msra.mxu0 %v95
    %165 = vmatpush.msra.mxu0 %v94
    %166 = vmatmul.f32.gmra.mxu0 %v148
    %v167 = vpop.f32.mrf.mxu0
    %v168 = vadd.f32 0.0, %v167
    %169 = vdwg.mxu0
    %v170 = vadd.f32 %v74, %v168
    %v171 = vmul.f32 %v170, 0.5
    %v172 = vtanh.pop %v171
    %v173 = vmul.f32 %v172, 0.5
    %v174 = vadd.f32 %v173, 0.5
    %v175 = vtanh.pop %v170
    %v176 = vmul.f32 %v174, %v138
    %178 = vrot.lane.b32.xlu0 %v175, 64
    %v179 = vpop.permute.xlu0 %178
    %v181 = vmul.f32 %v174, %v179
    %183 = vrot.lane.b32.xlu0 %v181, 96
    %v184 = vpop.permute.xlu0 %183
    %v186 = vadd.f32 %v176, %v184
    %v187 = vtanh.pop %v186
    %189 = vrot.lane.b32.xlu0 %v187, 64
    %v190 = vpop.permute.xlu0 %189
    %v192 = vmul.f32 %v174, %v190
    %194 = vrot.lane.b32.xlu0 %v192, 64
    %v195 = vpop.permute.xlu0 %194
    %v196 = vsel %vm98, %v195, 0
    %198 = vmatpush.msra.mxu0 0.0
    %199 = vmatpush.msra.mxu0 0.0
    %200 = vmatpush.msra.mxu0 0.0
    %201 = vmatpush.msra.mxu0 0.0
    %202 = vmatpush.msra.mxu0 0.0
    %203 = vmatpush.msra.mxu0 0.0
    %204 = vmatpush.msra.mxu0 0.0
    %205 = vmatpush.msra.mxu0 0.0
    %206 = vmatpush.msra.mxu0 0.0
    %207 = vmatpush.msra.mxu0 0.0
    %208 = vmatpush.msra.mxu0 0.0
    %209 = vmatpush.msra.mxu0 0.0
    %210 = vmatpush.msra.mxu0 %v97
    %211 = vmatpush.msra.mxu0 %v96
    %212 = vmatpush.msra.mxu0 %v95
    %213 = vmatpush.msra.mxu0 %v94
    %214 = vmatmul.f32.gmra.mxu0 %v196
    %v215 = vpop.f32.mrf.mxu0
    %v216 = vadd.f32 0.0, %v215
    %217 = vdwg.mxu0
    %v218 = vadd.f32 %v77, %v216
    %v219 = vmul.f32 %v218, 0.5
    %v220 = vtanh.pop %v219
    %v221 = vmul.f32 %v220, 0.5
    %v222 = vadd.f32 %v221, 0.5
    %v223 = vtanh.pop %v218
    %v224 = vmul.f32 %v222, %v186
    %226 = vrot.lane.b32.xlu0 %v223, 64
    %v227 = vpop.permute.xlu0 %226
    %v229 = vmul.f32 %v222, %v227
    %231 = vrot.lane.b32.xlu0 %v229, 96
    %v232 = vpop.permute.xlu0 %231
    %v234 = vadd.f32 %v224, %v232
    %v235 = vtanh.pop %v234
    %237 = vrot.lane.b32.xlu0 %v235, 64
    %v238 = vpop.permute.xlu0 %237
    %v240 = vmul.f32 %v222, %v238
    %242 = vrot.lane.b32.xlu0 %v240, 64
    %v243 = vpop.permute.xlu0 %242
    %v244 = vsel %vm98, %v243, 0
    %246 = vmatpush.msra.mxu0 0.0
    %247 = vmatpush.msra.mxu0 0.0
    %248 = vmatpush.msra.mxu0 0.0
    %249 = vmatpush.msra.mxu0 0.0
    %250 = vmatpush.msra.mxu0 0.0
    %251 = vmatpush.msra.mxu0 0.0
    %252 = vmatpush.msra.mxu0 0.0
    %253 = vmatpush.msra.mxu0 0.0
    %254 = vmatpush.msra.mxu0 0.0
    %255 = vmatpush.msra.mxu0 0.0
    %256 = vmatpush.msra.mxu0 0.0
    %257 = vmatpush.msra.mxu0 0.0
    %258 = vmatpush.msra.mxu0 %v97
    %259 = vmatpush.msra.mxu0 %v96
    %260 = vmatpush.msra.mxu0 %v95
    %261 = vmatpush.msra.mxu0 %v94
    %262 = vmatmul.f32.gmra.mxu0 %v244
    %v263 = vpop.f32.mrf.mxu0
    %v264 = vadd.f32 0.0, %v263
    %265 = vdwg.mxu0
    %v266 = vadd.f32 %v80, %v264
    %v267 = vmul.f32 %v266, 0.5
    %v268 = vtanh.pop %v267
    %v269 = vmul.f32 %v268, 0.5
    %v270 = vadd.f32 %v269, 0.5
    %v271 = vtanh.pop %v266
    %v272 = vmul.f32 %v270, %v234
    %274 = vrot.lane.b32.xlu0 %v271, 64
    %v275 = vpop.permute.xlu0 %274
    %v277 = vmul.f32 %v270, %v275
    %279 = vrot.lane.b32.xlu0 %v277, 96
    %v280 = vpop.permute.xlu0 %279
    %v282 = vadd.f32 %v272, %v280
    %v283 = vtanh.pop %v282
    %285 = vrot.lane.b32.xlu0 %v283, 64
    %v286 = vpop.permute.xlu0 %285
    %v288 = vmul.f32 %v270, %v286
    %290 = vrot.lane.b32.xlu0 %v288, 64
    %v291 = vpop.permute.xlu0 %290
    %v292 = vsel %vm98, %v291, 0
    %294 = vmatpush.msra.mxu0 0.0
    %295 = vmatpush.msra.mxu0 0.0
    %296 = vmatpush.msra.mxu0 0.0
    %297 = vmatpush.msra.mxu0 0.0
    %298 = vmatpush.msra.mxu0 0.0
    %299 = vmatpush.msra.mxu0 0.0
    %300 = vmatpush.msra.mxu0 0.0
    %301 = vmatpush.msra.mxu0 0.0
    %302 = vmatpush.msra.mxu0 0.0
    %303 = vmatpush.msra.mxu0 0.0
    %304 = vmatpush.msra.mxu0 0.0
    %305 = vmatpush.msra.mxu0 0.0
    %306 = vmatpush.msra.mxu0 %v97
    %307 = vmatpush.msra.mxu0 %v96
    %308 = vmatpush.msra.mxu0 %v95
    %309 = vmatpush.msra.mxu0 %v94
    %310 = vmatmul.f32.gmra.mxu0 %v292
    %v311 = vpop.f32.mrf.mxu0
    %v312 = vadd.f32 0.0, %v311
    %313 = vdwg.mxu0
    %v314 = vadd.f32 %v83, %v312
    %v315 = vmul.f32 %v314, 0.5
    %v316 = vtanh.pop %v315
    %v317 = vmul.f32 %v316, 0.5
    %v318 = vadd.f32 %v317, 0.5
    %v319 = vtanh.pop %v314
    %v320 = vmul.f32 %v318, %v282
    %322 = vrot.lane.b32.xlu0 %v319, 64
    %v323 = vpop.permute.xlu0 %322
    %v325 = vmul.f32 %v318, %v323
    %327 = vrot.lane.b32.xlu0 %v325, 96
    %v328 = vpop.permute.xlu0 %327
    %v330 = vadd.f32 %v320, %v328
    %v331 = vtanh.pop %v330
    %333 = vrot.lane.b32.xlu0 %v331, 64
    %v334 = vpop.permute.xlu0 %333
    %v336 = vmul.f32 %v318, %v334
    %338 = vrot.lane.b32.xlu0 %v336, 64
    %v339 = vpop.permute.xlu0 %338
    %v340 = vsel %vm98, %v339, 0
    %342 = vmatpush.msra.mxu0 0.0
    %343 = vmatpush.msra.mxu0 0.0
    %344 = vmatpush.msra.mxu0 0.0
    %345 = vmatpush.msra.mxu0 0.0
    %346 = vmatpush.msra.mxu0 0.0
    %347 = vmatpush.msra.mxu0 0.0
    %348 = vmatpush.msra.mxu0 0.0
    %349 = vmatpush.msra.mxu0 0.0
    %350 = vmatpush.msra.mxu0 0.0
    %351 = vmatpush.msra.mxu0 0.0
    %352 = vmatpush.msra.mxu0 0.0
    %353 = vmatpush.msra.mxu0 0.0
    %354 = vmatpush.msra.mxu0 %v97
    %355 = vmatpush.msra.mxu0 %v96
    %356 = vmatpush.msra.mxu0 %v95
    %357 = vmatpush.msra.mxu0 %v94
    %358 = vmatmul.f32.gmra.mxu0 %v340
    %v359 = vpop.f32.mrf.mxu0
    %v360 = vadd.f32 0.0, %v359
    %361 = vdwg.mxu0
    %v362 = vadd.f32 %v86, %v360
    %v363 = vmul.f32 %v362, 0.5
    %v364 = vtanh.pop %v363
    %v365 = vmul.f32 %v364, 0.5
    %v366 = vadd.f32 %v365, 0.5
    %v367 = vtanh.pop %v362
    %v368 = vmul.f32 %v366, %v330
    %370 = vrot.lane.b32.xlu0 %v367, 64
    %v371 = vpop.permute.xlu0 %370
    %v373 = vmul.f32 %v366, %v371
    %375 = vrot.lane.b32.xlu0 %v373, 96
    %v376 = vpop.permute.xlu0 %375
    %v378 = vadd.f32 %v368, %v376
    %v379 = vtanh.pop %v378
    %381 = vrot.lane.b32.xlu0 %v379, 64
    %v382 = vpop.permute.xlu0 %381
    %v384 = vmul.f32 %v366, %v382
    %386 = vrot.lane.b32.xlu0 %v384, 64
    %v387 = vpop.permute.xlu0 %386
    %v388 = vsel %vm98, %v387, 0
    %390 = vmatpush.msra.mxu0 0.0
    %391 = vmatpush.msra.mxu0 0.0
    %392 = vmatpush.msra.mxu0 0.0
    %393 = vmatpush.msra.mxu0 0.0
    %394 = vmatpush.msra.mxu0 0.0
    %395 = vmatpush.msra.mxu0 0.0
    %396 = vmatpush.msra.mxu0 0.0
    %397 = vmatpush.msra.mxu0 0.0
    %398 = vmatpush.msra.mxu0 0.0
    %399 = vmatpush.msra.mxu0 0.0
    %400 = vmatpush.msra.mxu0 0.0
    %401 = vmatpush.msra.mxu0 0.0
    %402 = vmatpush.msra.mxu0 %v97
    %403 = vmatpush.msra.mxu0 %v96
    %404 = vmatpush.msra.mxu0 %v95
    %405 = vmatpush.msra.mxu0 %v94
    %406 = vmatmul.f32.gmra.mxu0 %v388
    %v407 = vpop.f32.mrf.mxu0
    %v408 = vadd.f32 0.0, %v407
    %409 = vdwg.mxu0
    %v410 = vadd.f32 %v89, %v408
    %v411 = vmul.f32 %v410, 0.5
    %v412 = vtanh.pop %v411
    %v413 = vmul.f32 %v412, 0.5
    %v414 = vadd.f32 %v413, 0.5
    %v415 = vtanh.pop %v410
    %v416 = vmul.f32 %v414, %v378
    %418 = vrot.lane.b32.xlu0 %v415, 64
    %v419 = vpop.permute.xlu0 %418
    %v421 = vmul.f32 %v414, %v419
    %423 = vrot.lane.b32.xlu0 %v421, 96
    %v424 = vpop.permute.xlu0 %423
    %v426 = vadd.f32 %v416, %v424
    %v427 = vtanh.pop %v426
    %429 = vrot.lane.b32.xlu0 %v427, 64
    %v430 = vpop.permute.xlu0 %429
    %v432 = vmul.f32 %v414, %v430
    %434 = vrot.lane.b32.xlu0 %v432, 64
    %v435 = vpop.permute.xlu0 %434
    %v436 = vsel %vm98, %v435, 0
    %438 = vmatpush.msra.mxu0 0.0
    %439 = vmatpush.msra.mxu0 0.0
    %440 = vmatpush.msra.mxu0 0.0
    %441 = vmatpush.msra.mxu0 0.0
    %442 = vmatpush.msra.mxu0 0.0
    %443 = vmatpush.msra.mxu0 0.0
    %444 = vmatpush.msra.mxu0 0.0
    %445 = vmatpush.msra.mxu0 0.0
    %446 = vmatpush.msra.mxu0 0.0
    %447 = vmatpush.msra.mxu0 0.0
    %448 = vmatpush.msra.mxu0 0.0
    %449 = vmatpush.msra.mxu0 0.0
    %450 = vmatpush.msra.mxu0 %v97
    %451 = vmatpush.msra.mxu0 %v96
    %452 = vmatpush.msra.mxu0 %v95
    %453 = vmatpush.msra.mxu0 %v94
    %454 = vmatmul.f32.gmra.mxu0 %v436
    %v455 = vpop.f32.mrf.mxu0
    %v456 = vadd.f32 0.0, %v455
    %457 = vdwg.mxu0
    %v458 = vadd.f32 %v92, %v456
    %v459 = vmul.f32 %v458, 0.5
    %v460 = vtanh.pop %v459
    %v461 = vmul.f32 %v460, 0.5
    %v462 = vadd.f32 %v461, 0.5
    %v463 = vtanh.pop %v458
    %v464 = vmul.f32 %v462, %v426
    %466 = vrot.lane.b32.xlu0 %v463, 64
    %v467 = vpop.permute.xlu0 %466
    %v469 = vmul.f32 %v462, %v467
    %471 = vrot.lane.b32.xlu0 %v469, 96
    %v472 = vpop.permute.xlu0 %471
    %v474 = vadd.f32 %v464, %v472
    %v475 = vtanh.pop %v474
    %477 = vrot.lane.b32.xlu0 %v475, 64
    %v478 = vpop.permute.xlu0 %477
    %v480 = vmul.f32 %v462, %v478
    %482 = vrot.lane.b32.xlu0 %v480, 64
    %v483 = vpop.permute.xlu0 %482
    %485 = vst.msk [vmem:[#allocation2] sm:$0xff] %vm98, %v483
    // Predicated region
    $region14: #{tpu_custom_call.1} parent=1 // pred_check
      _
    $region15: #{tpu_custom_call.1} parent=1 // pred_check_branch
      %487 = sbr.rel (0) target = $region17
    $region16: #{tpu_custom_call.1} parent=1 // pred_region
      %489 = vsyncadd [#allocation3], 0
      %s491 = sshll.u32 [#allocation2], 4
      %s492 = int_to_ptr.vmem [resolvable:$true] %s491
      %s493 = sshll.u32 %s3, 4
      %s494 = int_to_ptr.hbm [resolvable:$true] %s493
      %496 = dma.vmem_to_hbm [thread:$0]  %s492, 128, %s494, [#allocation3]
    $region17: #{tpu_custom_call.1} parent=1 // pred_fallthru
      _
    // Predicated region
    $region18: #{tpu_custom_call.1} parent=1 // pred_check
      _
    $region19: #{tpu_custom_call.1} parent=1 // pred_check_branch
      %498 = sbr.rel (0) target = $region21
    $region20: #{tpu_custom_call.1} parent=1 // pred_region
      %500 = dma.done [#allocation3], 128
    $region21: #{tpu_custom_call.1} parent=1 // pred_fallthru
      _
    %501 = vsyncpa [#allocation3], 1

</llo_original>
